<compile_context>
chip_gen: v6e
topology: v6e:2x2x1
jax: 0.10.0
libtpu: 0.0.40
codegen_flags: <defaults>
</compile_context>

<pallas_src>
import math

import jax
import jax.numpy as jnp
import numpy as np
from jax.experimental import pallas as pl
from jax.experimental.pallas import tpu as pltpu

# ---- small, fixed config consistent with the module ----
B = 2            # batch
T = 8            # sequence length
C = 32           # n_embed
HID = 4 * C      # hidden width (= 128, one full lane tile)
_GELU_K = 0.7978845608028654  # sqrt(2/pi)

# ---- parameter-slab layout (all offsets 16-row aligned: bf16 sublane tile) ----
ROW_WFC = 0            # rows   0:32   -> c_fc weight   (C, HID)
ROW_WMP = 32           # rows  32:160  -> c_proj weight (HID, C) zero-padded to (HID, 128)
ROW_BFC = 160          # row   160     -> c_fc bias     (1, HID)
ROW_BMP = 176          # row   176     -> c_proj bias   (1, C)  zero-padded to (1, 128)
SLAB_ROWS = 192        # total rows (multiple of 16)


def _gelu_tanh(x):
    return 0.5 * x * (1.0 + jnp.tanh(_GELU_K * (x + 0.044715 * x * x * x)))


def mlp_kernel(x_ref, p_ref, o_ref):
    # x_ref: (B*T, C)  f32 activations (batch+seq folded into matmul M)
    # p_ref: (192,128) bf16 packed parameter slab
    # o_ref: (B*T,128) f32 lane-dense output (first C lanes are the real result)
    x = x_ref[...].astype(jnp.bfloat16)                            # MXU operand -> bf16
    w_fc = p_ref[pl.ds(ROW_WFC, C), :]                             # (C, HID)   bf16
    w_mp = p_ref[pl.ds(ROW_WMP, HID), :]                           # (HID, 128) bf16 (cols C: are 0)
    b_fc = p_ref[pl.ds(ROW_BFC, 1), :].astype(jnp.float32)         # (1, HID)   f32
    b_mp = p_ref[pl.ds(ROW_BMP, 1), :].astype(jnp.float32)         # (1, 128)   f32 (lanes C: are 0)

    # c_fc + GELU (bias-add and GELU stay f32: v5e VPU/EUP have no bf16)
    h = jnp.dot(x, w_fc, preferred_element_type=jnp.float32) + b_fc      # (B*T, HID) f32
    g = _gelu_tanh(h)

    # c_proj: bf16 operands, f32 accumulate; padded columns stay exactly 0
    y = jnp.dot(g.astype(jnp.bfloat16), w_mp,
                preferred_element_type=jnp.float32) + b_mp                # (B*T, 128) f32
    o_ref[...] = y                                                        # unmasked lane-dense store


@jax.jit
def mlp_forward(x, param_slab):
    Bv, Tv, Cv = x.shape
    x2 = x.reshape(Bv * Tv, Cv)               # fold B,T into the matmul M dimension
    out = pl.pallas_call(
        mlp_kernel,
        out_shape=jax.ShapeDtypeStruct((Bv * Tv, HID), jnp.float32),
        # single invocation: whole (tiny) arrays resident in VMEM, no grid
        in_specs=[pl.BlockSpec(memory_space=pltpu.MemorySpace.VMEM)] * 2,
        out_specs=pl.BlockSpec(memory_space=pltpu.MemorySpace.VMEM),
    )(x2, param_slab)
    return out[:, :Cv].reshape(Bv, Tv, Cv)    # drop the padded lanes (fused under jit)


# -------- one-time parameter preparation (NOT on the per-call path) --------
def pack_params(params):
    """Pack (w_fc, b_fc, w_mp, b_mp) f32 params into one (192,128) bf16 slab."""
    w_fc, b_fc, w_mp, b_mp = params
    slab = jnp.zeros((SLAB_ROWS, HID), jnp.bfloat16)
    slab = slab.at[ROW_WFC:ROW_WFC + C, :].set(w_fc.astype(jnp.bfloat16))
    slab = slab.at[ROW_WMP:ROW_WMP + HID, :C].set(w_mp.astype(jnp.bfloat16))
    slab = slab.at[ROW_BFC, :].set(b_fc[0].astype(jnp.bfloat16))
    slab = slab.at[ROW_BMP, :C].set(b_mp[0].astype(jnp.bfloat16))
    return slab


# -------- deterministic parameter init (PyTorch nn.Linear-style) --------
def init_params(key):
    def linear(k, fan_in, fan_out):
        kw, kb = jax.random.split(k)
        bound = 1.0 / math.sqrt(fan_in)
        w = jax.random.uniform(kw, (fan_in, fan_out), jnp.float32, -bound, bound)
        b = jax.random.uniform(kb, (1, fan_out), jnp.float32, -bound, bound)
        return w, b

    k1, k2 = jax.random.split(key)
    w_fc, b_fc = linear(k1, C, HID)     # c_fc   (stored as (in, out) -> no in-kernel transpose)
    w_mp, b_mp = linear(k2, HID, C)     # c_proj
    return (w_fc, b_fc, w_mp, b_mp)


# -------- pure-JAX f32 reference (mirrors the PyTorch forward) --------
def mlp_ref(x, params):
    w_fc, b_fc, w_mp, b_mp = params
    h = x @ w_fc + b_fc
    g = 0.5 * h * (1.0 + jnp.tanh(_GELU_K * (h + 0.044715 * h ** 3)))
    return g @ w_mp + b_mp


if __name__ == "__main__":
    key = jax.random.PRNGKey(0)
    kx, kp = jax.random.split(key)
    x = jax.random.normal(kx, (B, T, C), jnp.float32)
    params = init_params(kp)
    param_slab = jax.block_until_ready(pack_params(params))   # built once, off the hot path

    out = jax.block_until_ready(mlp_forward(x, param_slab))
    ref = jax.block_until_ready(mlp_ref(x, params))

    np.testing.assert_allclose(np.asarray(out), np.asarray(ref), atol=2e-2, rtol=2e-2)
    print("KERNEL_OK")
</pallas_src>

<mosaic_0001>
module attributes {stable_mosaic.version = 11 : i64} {
  func.func @mlp_kernel(%arg0: memref<16x32xf32, #tpu.memory_space<vmem>>, %arg1: memref<192x128xbf16, #tpu.memory_space<vmem>>, %arg2: memref<16x128xf32, #tpu.memory_space<vmem>>) attributes {dimension_semantics = [], scalar_prefetch = 0 : i64, scratch_operands = 0 : i64, tpu.core_type = #tpu.core_type<tc>} {
    %c0 = arith.constant 0 : index
    %c0_0 = arith.constant 0 : index
    %0 = vector.load %arg0[%c0, %c0_0] : memref<16x32xf32, #tpu.memory_space<vmem>>, vector<16x32xf32>
    %1 = arith.truncf %0 : vector<16x32xf32> to vector<16x32xbf16>
    %c0_1 = arith.constant 0 : index
    %c0_2 = arith.constant 0 : index
    %2 = vector.load %arg1[%c0_1, %c0_2] : memref<192x128xbf16, #tpu.memory_space<vmem>>, vector<32x128xbf16>
    %c32 = arith.constant 32 : index
    %c0_3 = arith.constant 0 : index
    %3 = vector.load %arg1[%c32, %c0_3] : memref<192x128xbf16, #tpu.memory_space<vmem>>, vector<128x128xbf16>
    %c160 = arith.constant 160 : index
    %c0_4 = arith.constant 0 : index
    %4 = vector.load %arg1[%c160, %c0_4] : memref<192x128xbf16, #tpu.memory_space<vmem>>, vector<1x128xbf16>
    %5 = arith.extf %4 : vector<1x128xbf16> to vector<1x128xf32>
    %c176 = arith.constant 176 : index
    %c0_5 = arith.constant 0 : index
    %6 = vector.load %arg1[%c176, %c0_5] : memref<192x128xbf16, #tpu.memory_space<vmem>>, vector<1x128xbf16>
    %7 = arith.extf %6 : vector<1x128xbf16> to vector<1x128xf32>
    %cst = arith.constant dense<0.000000e+00> : vector<16x128xf32>
    %8 = tpu.matmul %1, %2, %cst {dimension_numbers = #tpu.dot_dimension_numbers<[1], [0], [0], [1], [0, 0, 1, 1], [], []>} : vector<16x32xbf16>, vector<32x128xbf16>, vector<16x128xf32> -> vector<16x128xf32>
    %9 = vector.broadcast %5 : vector<1x128xf32> to vector<16x128xf32>
    %10 = arith.addf %8, %9 : vector<16x128xf32>
    %cst_6 = arith.constant 5.000000e-01 : f32
    %11 = vector.broadcast %cst_6 : f32 to vector<16x128xf32>
    %12 = arith.mulf %11, %10 : vector<16x128xf32>
    %cst_7 = arith.constant 4.471500e-02 : f32
    %13 = vector.broadcast %cst_7 : f32 to vector<16x128xf32>
    %14 = arith.mulf %13, %10 : vector<16x128xf32>
    %15 = arith.mulf %14, %10 : vector<16x128xf32>
    %16 = arith.mulf %15, %10 : vector<16x128xf32>
    %17 = arith.addf %10, %16 : vector<16x128xf32>
    %cst_8 = arith.constant 0.797884583 : f32
    %18 = vector.broadcast %cst_8 : f32 to vector<16x128xf32>
    %19 = arith.mulf %18, %17 : vector<16x128xf32>
    %20 = math.tanh %19 : vector<16x128xf32>
    %cst_9 = arith.constant 1.000000e+00 : f32
    %21 = vector.broadcast %cst_9 : f32 to vector<16x128xf32>
    %22 = arith.addf %21, %20 : vector<16x128xf32>
    %23 = arith.mulf %12, %22 : vector<16x128xf32>
    %24 = arith.truncf %23 : vector<16x128xf32> to vector<16x128xbf16>
    %cst_10 = arith.constant dense<0.000000e+00> : vector<16x128xf32>
    %25 = tpu.matmul %24, %3, %cst_10 {dimension_numbers = #tpu.dot_dimension_numbers<[1], [0], [0], [1], [0, 0, 1, 1], [], []>} : vector<16x128xbf16>, vector<128x128xbf16>, vector<16x128xf32> -> vector<16x128xf32>
    %26 = vector.broadcast %7 : vector<1x128xf32> to vector<16x128xf32>
    %27 = arith.addf %25, %26 : vector<16x128xf32>
    %c0_11 = arith.constant 0 : index
    %c0_12 = arith.constant 0 : index
    %28 = vector.load %arg2[%c0_11, %c0_12] : memref<16x128xf32, #tpu.memory_space<vmem>>, vector<16x128xf32>
    tpu.vector_store %arg2[%c0_11, %c0_12], %27 {strides = array<i32>} : memref<16x128xf32, #tpu.memory_space<vmem>>, vector<16x128xf32>,
    return
  }
}

</mosaic_0001>

<llo_original>
// kernel: mlp_forward.1
$region0: #{mlp_forward.1}
  #allocation0 [shape = 'u32[]', space=smem, size = 0x4, offset = 0x4, fixed_abs, tag = 'smem constant byte address 0x4 - core index']
  #allocation1 [shape = 'u32[144,128]{1,0:T(1,128)}', space=vmem, size = 0x12000, scoped, tag = 'internal scratch']
  %s0 = inlined_call_operand.hbm [shape: f32[16,32], index: 0, kind: input, shape index: {}]
  %s1 = inlined_call_operand.hbm [shape: bf16[192,128], index: 1, kind: input, shape index: {}]
  %s2 = inlined_call_operand.vmem [shape: f32[16,128], index: 2, kind: output, shape index: {}]
  %s3 = sld [smem:[#allocation0]]
  $region26: #{mlp_forward.1} parent=0
    _
  %s5 = ssub.s32 1, %s3
  %s6 = scalar_select 0, %s5, %s3
  $region1: #{mlp_forward.1} parent=0
    #allocation2 [shape = 'u8[8192]{0}', space=vmem, size = 0x2000, scoped, tag = 'input window, operand 0, single buffered']
    #allocation3 [shape = 's32[1]{0}', space=sflag, size = 0x4, scoped, tag = 'scoped memory for mlp_forward.1']
    #allocation4 [shape = 'u8[49152]{0}', space=vmem, size = 0xc000, scoped, tag = 'input window, operand 1, single buffered']
    #allocation5 [shape = 's32[1]{0}', space=sflag, size = 0x4, scoped, tag = 'scoped memory for mlp_forward.1']
    %7 = vsyncpa [#allocation3], 0
    %8 = vsyncpa [#allocation5], 0
    // Predicated region
    $region2: #{mlp_forward.1} parent=1 // pred_check
      _
    $region3: #{mlp_forward.1} parent=1 // pred_check_branch
      %10 = sbr.rel (0) target = $region5
    $region4: #{mlp_forward.1} parent=1 // pred_region
      %s12 = ssub.s32 256, 256
      %13 = vsyncadd [#allocation3], %s12
      %s14 = sshll.u32 [#allocation2], 4
      %s15 = int_to_ptr.vmem [resolvable:$true] %s14
      %20 = dma.hbm_to_vmem [thread:$0]  %s0, 256, %s15, [#allocation3], 128, 128, 8
    $region5: #{mlp_forward.1} parent=1 // pred_fallthru
      _
    // Predicated region
    $region6: #{mlp_forward.1} parent=1 // pred_check
      _
    $region7: #{mlp_forward.1} parent=1 // pred_check_branch
      %22 = sbr.rel (0) target = $region9
    $region8: #{mlp_forward.1} parent=1 // pred_region
      %s24 = ssub.s32 1536, 1536
      %25 = vsyncadd [#allocation5], %s24
      %s26 = sshll.u32 [#allocation4], 4
      %s27 = int_to_ptr.vmem [resolvable:$true] %s26
      %32 = dma.hbm_to_vmem [thread:$0]  %s1, 1536, %s27, [#allocation5], 64, 64, 4
    $region9: #{mlp_forward.1} parent=1 // pred_fallthru
      _
    // Predicated region
    $region10: #{mlp_forward.1} parent=1 // pred_check
      _
    $region11: #{mlp_forward.1} parent=1 // pred_check_branch
      %34 = sbr.rel (0) target = $region13
    $region12: #{mlp_forward.1} parent=1 // pred_region
      %35 = dma.done [#allocation3], 256
    $region13: #{mlp_forward.1} parent=1 // pred_fallthru
      _
    // Predicated region
    $region14: #{mlp_forward.1} parent=1 // pred_check
      _
    $region15: #{mlp_forward.1} parent=1 // pred_check_branch
      %37 = sbr.rel (0) target = $region17
    $region16: #{mlp_forward.1} parent=1 // pred_region
      %38 = dma.done [#allocation5], 1536
    $region17: #{mlp_forward.1} parent=1 // pred_fallthru
      _
    %v40 = vld [vmem:[#allocation2] sm:$0xff]
    %v41 = vld [vmem:[#allocation2 + $0x8] sm:$0xff]
    %v42 = vpack.c.bf16 %v41, %v40
    %v43 = vld [vmem:[#allocation4] sm:$0xf]
    %v44 = vld [vmem:[#allocation4 + $0x4] sm:$0xf]
    %v45 = vld [vmem:[#allocation4 + $0x8] sm:$0xf]
    %v46 = vld [vmem:[#allocation4 + $0xc] sm:$0xf]
    %v47 = vld [vmem:[#allocation4 + $0x10] sm:$0xf]
    %v48 = vld [vmem:[#allocation4 + $0x14] sm:$0xf]
    %v49 = vld [vmem:[#allocation4 + $0x18] sm:$0xf]
    %v50 = vld [vmem:[#allocation4 + $0x1c] sm:$0xf]
    %v51 = vld [vmem:[#allocation4 + $0x20] sm:$0xf]
    %v52 = vld [vmem:[#allocation4 + $0x24] sm:$0xf]
    %v53 = vld [vmem:[#allocation4 + $0x28] sm:$0xf]
    %v54 = vld [vmem:[#allocation4 + $0x2c] sm:$0xf]
    %v55 = vld [vmem:[#allocation4 + $0x30] sm:$0xf]
    %v56 = vld [vmem:[#allocation4 + $0x34] sm:$0xf]
    %v57 = vld [vmem:[#allocation4 + $0x38] sm:$0xf]
    %v58 = vld [vmem:[#allocation4 + $0x3c] sm:$0xf]
    %v59 = vld [vmem:[#allocation4 + $0x40] sm:$0xf]
    %v60 = vld [vmem:[#allocation4 + $0x44] sm:$0xf]
    %v61 = vld [vmem:[#allocation4 + $0x48] sm:$0xf]
    %v62 = vld [vmem:[#allocation4 + $0x4c] sm:$0xf]
    %v63 = vld [vmem:[#allocation4 + $0x50] sm:$0x1]
    %v64 = vunpack.c.l.bf16 %v63
    %v65 = vld [vmem:[#allocation4 + $0x58] sm:$0x1]
    %v66 = vunpack.c.l.bf16 %v65
    %v67 = vlaneseq
    %v68 = vshrl.u32 %v67, 7
    %v69 = vsub.s32 0, %v68
    %v70 = vrot.slane %v64, %v69
    %v75 = vunpack.c.l.b16 %v43
    %v76 = vunpack.c.l.b16 %v44
    %v77 = vunpack.c.l.b16 %v45
    %v78 = vunpack.c.l.b16 %v46
    %v79 = vpack.c.b16 %v76, %v75
    %v80 = vpack.c.b16 %v78, %v77
    %vm83 = vcmask 261120
    %v85 = vsel %vm83, %v42, 0
    %87 = vmatprep.subr.bf16.mxu0 0
    %88 = vmatpush1.bf16.msra.mxu0 0
    %89 = vmatprep.subr.bf16.mxu0 0
    %90 = vmatpush1.bf16.msra.mxu0 0
    %91 = vmatprep.subr.bf16.mxu0 0
    %92 = vmatpush1.bf16.msra.mxu0 0
    %93 = vmatprep.subr.bf16.mxu0 0
    %94 = vmatpush1.bf16.msra.mxu0 0
    %95 = vmatprep.subr.bf16.mxu0 0
    %96 = vmatpush1.bf16.msra.mxu0 0
    %97 = vmatprep.subr.bf16.mxu0 0
    %98 = vmatpush1.bf16.msra.mxu0 0
    %99 = vmatprep.subr.bf16.mxu0 0
    %100 = vmatpush1.bf16.msra.mxu0 %v80
    %101 = vmatprep.subr.bf16.mxu0 0
    %102 = vmatpush1.bf16.msra.mxu0 %v79
    %103 = vmatprep.subr.bf16.mxu0 0
    %104 = vmatpush2.bf16.msra.mxu0 0
    %105 = vmatprep.subr.bf16.mxu0 0
    %106 = vmatpush2.bf16.msra.mxu0 0
    %107 = vmatprep.subr.bf16.mxu0 0
    %108 = vmatpush2.bf16.msra.mxu0 0
    %109 = vmatprep.subr.bf16.mxu0 0
    %110 = vmatpush2.bf16.msra.mxu0 0
    %111 = vmatprep.subr.bf16.mxu0 0
    %112 = vmatpush2.bf16.msra.mxu0 0
    %113 = vmatprep.subr.bf16.mxu0 0
    %114 = vmatpush2.bf16.msra.mxu0 0
    %115 = vmatprep.subr.bf16.mxu0 0
    %116 = vmatpush2.bf16.msra.mxu0 0
    %117 = vmatprep.subr.bf16.mxu0 0
    %118 = vmatpush2.bf16.msra.mxu0 0
    %119 = vmatprep.mubr.bf16.mxu0 0
    %120 = vmatmul.mubr.bf16.gmra.mxu0 %v85
    %v121 = vpop.f32.mrf.mxu0
    %v122 = vadd.f32 %v70, %v121
    %v123 = vpop.f32.mrf.mxu0
    %v124 = vpop.f32.mrf.mxu0
    %v125 = vadd.f32 %v70, %v124
    %v126 = vpop.f32.mrf.mxu0
    %127 = vdwg.mxu0
    %v128 = vmul.f32 %v122, 0.5
    %v129 = vmul.f32 %v125, 0.5
    %v130 = vmul.f32 %v122, 0.044715
    %v131 = vmul.f32 %v125, 0.044715
    %v132 = vmul.f32 %v130, %v122
    %v133 = vmul.f32 %v131, %v125
    %v134 = vmul.f32 %v132, %v122
    %v135 = vmul.f32 %v133, %v125
    %v136 = vadd.f32 %v122, %v134
    %v137 = vadd.f32 %v125, %v135
    %v138 = vmul.f32 %v136, 0.7978846
    %v139 = vmul.f32 %v137, 0.7978846
    %v140 = vtanh.pop %v138
    %v141 = vtanh.pop %v139
    %v142 = vadd.f32 %v140, 1.0
    %v143 = vadd.f32 %v141, 1.0
    %v144 = vmul.f32 %v128, %v142
    %v145 = vmul.f32 %v129, %v143
    %v146 = vpack.c.bf16 %v145, %v144
    %v147 = vlaneseq
    %v148 = vshrl.u32 %v147, 7
    %v149 = vsub.s32 0, %v148
    %v150 = vrot.slane %v66, %v149
    %v167 = vunpack.c.l.b16 %v47
    %v168 = vunpack.c.l.b16 %v48
    %v169 = vunpack.c.l.b16 %v49
    %v170 = vunpack.c.l.b16 %v50
    %v171 = vunpack.c.l.b16 %v51
    %v172 = vunpack.c.l.b16 %v52
    %v173 = vunpack.c.l.b16 %v53
    %v174 = vunpack.c.l.b16 %v54
    %v175 = vunpack.c.l.b16 %v55
    %v176 = vunpack.c.l.b16 %v56
    %v177 = vunpack.c.l.b16 %v57
    %v178 = vunpack.c.l.b16 %v58
    %v179 = vunpack.c.l.b16 %v59
    %v180 = vunpack.c.l.b16 %v60
    %v181 = vunpack.c.l.b16 %v61
    %v182 = vunpack.c.l.b16 %v62
    %v183 = vpack.c.b16 %v168, %v167
    %v184 = vpack.c.b16 %v170, %v169
    %v185 = vpack.c.b16 %v172, %v171
    %v186 = vpack.c.b16 %v174, %v173
    %v187 = vpack.c.b16 %v176, %v175
    %v188 = vpack.c.b16 %v178, %v177
    %v189 = vpack.c.b16 %v180, %v179
    %v190 = vpack.c.b16 %v182, %v181
    %199 = vmatprep.subr.bf16.mxu0 0
    %200 = vmatpush1.bf16.msra.mxu0 %v190
    %201 = vmatprep.subr.bf16.mxu0 0
    %202 = vmatpush1.bf16.msra.mxu0 %v189
    %203 = vmatprep.subr.bf16.mxu0 0
    %204 = vmatpush1.bf16.msra.mxu0 %v188
    %205 = vmatprep.subr.bf16.mxu0 0
    %206 = vmatpush1.bf16.msra.mxu0 %v187
    %207 = vmatprep.subr.bf16.mxu0 0
    %208 = vmatpush1.bf16.msra.mxu0 %v186
    %209 = vmatprep.subr.bf16.mxu0 0
    %210 = vmatpush1.bf16.msra.mxu0 %v185
    %211 = vmatprep.subr.bf16.mxu0 0
    %212 = vmatpush1.bf16.msra.mxu0 %v184
    %213 = vmatprep.subr.bf16.mxu0 0
    %214 = vmatpush1.bf16.msra.mxu0 %v183
    %215 = vmatprep.subr.bf16.mxu0 0
    %216 = vmatpush2.bf16.msra.mxu0 0
    %217 = vmatprep.subr.bf16.mxu0 0
    %218 = vmatpush2.bf16.msra.mxu0 0
    %219 = vmatprep.subr.bf16.mxu0 0
    %220 = vmatpush2.bf16.msra.mxu0 0
    %221 = vmatprep.subr.bf16.mxu0 0
    %222 = vmatpush2.bf16.msra.mxu0 0
    %223 = vmatprep.subr.bf16.mxu0 0
    %224 = vmatpush2.bf16.msra.mxu0 0
    %225 = vmatprep.subr.bf16.mxu0 0
    %226 = vmatpush2.bf16.msra.mxu0 0
    %227 = vmatprep.subr.bf16.mxu0 0
    %228 = vmatpush2.bf16.msra.mxu0 0
    %229 = vmatprep.subr.bf16.mxu0 0
    %230 = vmatpush2.bf16.msra.mxu0 0
    %231 = vmatprep.mubr.bf16.mxu0 0
    %232 = vmatmul.mubr.bf16.gmra.mxu0 %v146
    %v233 = vpop.f32.mrf.mxu0
    %v234 = vadd.f32 %v150, %v233
    %v235 = vpop.f32.mrf.mxu0
    %v236 = vpop.f32.mrf.mxu0
    %v237 = vadd.f32 %v150, %v236
    %v238 = vpop.f32.mrf.mxu0
    %239 = vdwg.mxu0
    %240 = vst [vmem:[%s2] sm:$0xff] %v234
    %241 = vst [vmem:[%s2 + $0x8] sm:$0xff] %v237
    // Predicated region
    $region18: #{mlp_forward.1} parent=1 // pred_check
      _
    $region19: #{mlp_forward.1} parent=1 // pred_check_branch
      %243 = sbr.rel (0) target = $region21
    $region20: #{mlp_forward.1} parent=1 // pred_region
      _
    $region21: #{mlp_forward.1} parent=1 // pred_fallthru
      _
    // Predicated region
    $region22: #{mlp_forward.1} parent=1 // pred_check
      _
    $region23: #{mlp_forward.1} parent=1 // pred_check_branch
      %245 = sbr.rel (0) target = $region25
    $region24: #{mlp_forward.1} parent=1 // pred_region
      _
    $region25: #{mlp_forward.1} parent=1 // pred_fallthru
      _
    %246 = vsyncpa [#allocation3], 1
    %247 = vsyncpa [#allocation5], 1

</llo_original>
